<compile_context>
chip_gen: v7x
topology: tpu7x:2x2x1
jax: 0.10.0
libtpu: 0.0.40
codegen_flags: <defaults>
</compile_context>

<pallas_src>
import functools

import jax
import jax.numpy as jnp
from jax.experimental import pallas as pl
from jax.experimental.pallas import tpu as pltpu


def _round_up(x, m):
    return (x + m - 1) // m * m


def _ce_loss_kernel(pred_ref, tgt_ref, out_ref, acc_ref, *, n_valid, tile_rows):
    i = pl.program_id(0)

    @pl.when(i == 0)
    def _init():
        acc_ref[...] = jnp.zeros_like(acc_ref)

    x = pred_ref[...].astype(jnp.float32)            # (TN, C) f32 compute
    t = tgt_ref[...]                                 # (TN, 1) int32

    # Numerically stable log-softmax pieces, all on z = x - max(x) (z <= 0).
    m = jnp.max(x, axis=1, keepdims=True)            # (TN, 1)
    z = x - m                                        # (TN, C)
    lse_z = jnp.log(jnp.sum(jnp.exp(z), axis=1, keepdims=True))      # (TN, 1)

    # Gather z[r, target[r]] via one-hot mask (TPU-friendly, no dynamic gather).
    col = jax.lax.broadcasted_iota(jnp.int32, z.shape, 1)             # (TN, C)
    sel_z = jnp.sum(jnp.where(col == t, z, jnp.float32(0.0)),
                    axis=1, keepdims=True)                            # (TN, 1)

    per_row = lse_z - sel_z                          # (TN, 1) = -log_softmax[target]

    # Mask rows past the true batch size (covers the partial edge block; any
    # garbage/NaN in those rows is discarded by the select).
    row = jax.lax.broadcasted_iota(jnp.int32, per_row.shape, 0) + i * tile_rows
    per_row = jnp.where(row < n_valid, per_row, jnp.float32(0.0))

    # Vector accumulate across tiles; reduce across lanes/sublanes only once.
    acc_ref[...] += per_row

    @pl.when(i == pl.num_programs(0) - 1)
    def _finalize():
        out_ref[0, 0] = jnp.sum(acc_ref[...]) * jnp.float32(1.0 / n_valid)


def ce_loss(pred, target, *, tile_rows=256):
    """Equivalent of the PyTorch CELoss.forward(pred, target)."""
    pred = jnp.asarray(pred)                         # keep caller dtype (f32 or bf16)
    n, c = pred.shape

    tgt = jnp.squeeze(jnp.asarray(target))           # target.squeeze()
    tgt = tgt.astype(jnp.int32).reshape(n, 1)        # .long() -> int32 indices

    # Tile height: multiple of 8 (sublane), capped to the (8-rounded) batch.
    tn = min(_round_up(tile_rows, 8), _round_up(n, 8))
    num_tiles = pl.cdiv(n, tn)                       # partial last block allowed

    kernel = functools.partial(_ce_loss_kernel, n_valid=n, tile_rows=tn)

    out = pl.pallas_call(
        kernel,
        out_shape=jax.ShapeDtypeStruct((1, 1), jnp.float32),
        grid_spec=pltpu.PrefetchScalarGridSpec(
            num_scalar_prefetch=0,
            grid=(num_tiles,),
            in_specs=[
                pl.BlockSpec((tn, c), lambda i: (i, 0)),   # pred row tile
                pl.BlockSpec((tn, 1), lambda i: (i, 0)),   # target row tile
            ],
            out_specs=pl.BlockSpec(memory_space=pltpu.MemorySpace.SMEM),
            scratch_shapes=[pltpu.VMEM((tn, 1), jnp.float32)],
        ),
        compiler_params=pltpu.CompilerParams(
            dimension_semantics=("arbitrary",)),
    )(pred, tgt)
    return out[0, 0]


def _reference(pred, target):
    pred = jnp.asarray(pred, jnp.float32)
    tgt = jnp.squeeze(jnp.asarray(target)).astype(jnp.int32)
    logp = jax.nn.log_softmax(pred, axis=1)
    n = pred.shape[0]
    return -jnp.sum(logp[jnp.arange(n), tgt]) / n


if __name__ == "__main__":
    key = jax.random.PRNGKey(0)
    k1, k2, k3, k4 = jax.random.split(key, 4)

    # Case 1: small, single tile; target shaped (N, 1) to exercise .squeeze().
    N1, C1 = 8, 32
    pred1 = jax.random.normal(k1, (N1, C1), dtype=jnp.float32)
    tgt1 = jax.random.randint(k2, (N1, 1), 0, C1, dtype=jnp.int32)

    loss1 = ce_loss(pred1, tgt1)
    jax.block_until_ready(loss1)
    ref1 = _reference(pred1, tgt1)
    assert jnp.allclose(loss1, ref1, atol=1e-5, rtol=1e-5), (loss1, ref1)

    # Case 2: multiple tiles with a ragged remainder (exercises the partial
    # edge block + row masking + cross-tile accumulation).
    N2, C2 = 50, 160
    pred2 = jax.random.normal(k3, (N2, C2), dtype=jnp.float32)
    tgt2 = jax.random.randint(k4, (N2,), 0, C2, dtype=jnp.int32)

    loss2 = ce_loss(pred2, tgt2, tile_rows=16)
    jax.block_until_ready(loss2)
    ref2 = _reference(pred2, tgt2)
    assert jnp.allclose(loss2, ref2, atol=1e-5, rtol=1e-5), (loss2, ref2)

    print("KERNEL_OK")
</pallas_src>

<mosaic_0001>
module attributes {stable_mosaic.version = 11 : i64} {
  func.func @_ce_loss_kernel(%arg0: i32, %arg1: memref<8x32xf32, #tpu.memory_space<vmem>>, %arg2: memref<8x1xi32, #tpu.memory_space<vmem>>, %arg3: memref<1x1xf32, #tpu.memory_space<smem>>, %arg4: memref<8x1xf32, #tpu.memory_space<vmem>>) attributes {dimension_semantics = [#tpu.dimension_semantics<arbitrary>], iteration_bounds = array<i64: 1>, scalar_prefetch = 0 : i64, scratch_operands = 1 : i64, tpu.core_type = #tpu.core_type<tc>, window_params = [{transform_indices = @transform_0, window_bounds = array<i64: 8, 32>}, {transform_indices = @transform_1, window_bounds = array<i64: 8, 1>}, {transform_indices = @transform_2, window_bounds = array<i64: 1, 1>}]} {
    %c0_i32 = arith.constant 0 : i32
    %0 = arith.cmpi eq, %arg0, %c0_i32 : i32
    %1 = arith.extui %0 : i1 to i32
    %c0_i32_0 = arith.constant 0 : i32
    %2 = arith.cmpi ne, %1, %c0_i32_0 : i32
    scf.if %2 {
      %cst_15 = arith.constant 0.000000e+00 : f32
      %35 = vector.broadcast %cst_15 : f32 to vector<8x1xf32>
      %c0_16 = arith.constant 0 : index
      %c0_17 = arith.constant 0 : index
      %36 = vector.load %arg4[%c0_16, %c0_17] : memref<8x1xf32, #tpu.memory_space<vmem>>, vector<8x1xf32>
      tpu.vector_store %arg4[%c0_16, %c0_17], %35 {strides = array<i32>} : memref<8x1xf32, #tpu.memory_space<vmem>>, vector<8x1xf32>,
    } else {
    }
    %c0 = arith.constant 0 : index
    %c0_1 = arith.constant 0 : index
    %3 = vector.load %arg1[%c0, %c0_1] : memref<8x32xf32, #tpu.memory_space<vmem>>, vector<8x32xf32>
    %c0_2 = arith.constant 0 : index
    %c0_3 = arith.constant 0 : index
    %4 = vector.load %arg2[%c0_2, %c0_3] : memref<8x1xi32, #tpu.memory_space<vmem>>, vector<8x1xi32>
    %cst = arith.constant dense<0xFF800000> : vector<8xf32>
    %5 = vector.multi_reduction <maximumf>, %3, %cst [1] : vector<8x32xf32> to vector<8xf32>
    %6 = vector.shape_cast %5 : vector<8xf32> to vector<8x1xf32>
    %7 = vector.broadcast %6 : vector<8x1xf32> to vector<8x32xf32>
    %8 = arith.subf %3, %7 : vector<8x32xf32>
    %9 = math.exp %8 : vector<8x32xf32>
    %cst_4 = arith.constant dense<0.000000e+00> : vector<8xf32>
    %10 = vector.multi_reduction <add>, %9, %cst_4 [1] : vector<8x32xf32> to vector<8xf32>
    %11 = vector.shape_cast %10 : vector<8xf32> to vector<8x1xf32>
    %12 = math.log %11 : vector<8x1xf32>
    %13 = tpu.iota {dimensions = array<i32: 1>} : vector<8x32xi32>
    %14 = vector.broadcast %4 : vector<8x1xi32> to vector<8x32xi32>
    %15 = arith.cmpi eq, %13, %14 : vector<8x32xi32>
    %cst_5 = arith.constant 0.000000e+00 : f32
    %16 = vector.broadcast %cst_5 : f32 to vector<8x32xf32>
    %17 = arith.select %15, %8, %16 : vector<8x32xi1>, vector<8x32xf32>
    %cst_6 = arith.constant dense<0.000000e+00> : vector<8xf32>
    %18 = vector.multi_reduction <add>, %17, %cst_6 [1] : vector<8x32xf32> to vector<8xf32>
    %19 = vector.shape_cast %18 : vector<8xf32> to vector<8x1xf32>
    %20 = arith.subf %12, %19 : vector<8x1xf32>
    %21 = tpu.iota {dimensions = array<i32: 0>} : vector<8x1xi32>
    %c8_i32 = arith.constant 8 : i32
    %22 = arith.muli %arg0, %c8_i32 : i32
    %23 = vector.broadcast %22 : i32 to vector<8x1xi32>
    %24 = arith.addi %21, %23 : vector<8x1xi32>
    %c8_i32_7 = arith.constant 8 : i32
    %25 = vector.broadcast %c8_i32_7 : i32 to vector<8x1xi32>
    %26 = arith.cmpi slt, %24, %25 : vector<8x1xi32>
    %cst_8 = arith.constant 0.000000e+00 : f32
    %27 = vector.broadcast %cst_8 : f32 to vector<8x1xf32>
    %28 = arith.select %26, %20, %27 : vector<8x1xi1>, vector<8x1xf32>
    %c0_9 = arith.constant 0 : index
    %c0_10 = arith.constant 0 : index
    %29 = vector.load %arg4[%c0_9, %c0_10] : memref<8x1xf32, #tpu.memory_space<vmem>>, vector<8x1xf32>
    %30 = arith.addf %29, %28 : vector<8x1xf32>
    %c0_11 = arith.constant 0 : index
    %c0_12 = arith.constant 0 : index
    %31 = vector.load %arg4[%c0_11, %c0_12] : memref<8x1xf32, #tpu.memory_space<vmem>>, vector<8x1xf32>
    tpu.vector_store %arg4[%c0_11, %c0_12], %30 {strides = array<i32>} : memref<8x1xf32, #tpu.memory_space<vmem>>, vector<8x1xf32>,
    %c0_i32_13 = arith.constant 0 : i32
    %32 = arith.cmpi eq, %arg0, %c0_i32_13 : i32
    %33 = arith.extui %32 : i1 to i32
    %c0_i32_14 = arith.constant 0 : i32
    %34 = arith.cmpi ne, %33, %c0_i32_14 : i32
    scf.if %34 {
      %c0_15 = arith.constant 0 : index
      %c0_16 = arith.constant 0 : index
      %35 = vector.load %arg4[%c0_15, %c0_16] : memref<8x1xf32, #tpu.memory_space<vmem>>, vector<8x1xf32>
      %36 = vector.shape_cast %35 : vector<8x1xf32> to vector<1x8x1xf32>
      %cst_17 = arith.constant dense<0.000000e+00> : vector<1xf32>
      %37 = vector.multi_reduction <add>, %36, %cst_17 [1, 2] : vector<1x8x1xf32> to vector<1xf32>
      %38 = vector.shape_cast %37 : vector<1xf32> to vector<1x1x1xf32>
      %39 = vector.extract %38[0, 0, 0] : f32 from vector<1x1x1xf32>
      %cst_18 = arith.constant 1.250000e-01 : f32
      %40 = arith.mulf %39, %cst_18 : f32
      %c0_19 = arith.constant 0 : index
      %c0_20 = arith.constant 0 : index
      %41 = memref.load %arg3[%c0_19, %c0_20] : memref<1x1xf32, #tpu.memory_space<smem>>
      memref.store %40, %arg3[%c0_19, %c0_20] : memref<1x1xf32, #tpu.memory_space<smem>>
    } else {
    }
    return
  }
  func.func @transform_0(%arg0: i32) -> (i32, i32) {
    %c0_i32 = arith.constant 0 : i32
    %c0_i32_0 = arith.constant 0 : i32
    return %arg0, %c0_i32 : i32, i32
  }
  func.func @transform_1(%arg0: i32) -> (i32, i32) {
    %c0_i32 = arith.constant 0 : i32
    %c0_i32_0 = arith.constant 0 : i32
    return %arg0, %c0_i32 : i32, i32
  }
  func.func @transform_2(%arg0: i32) -> (i32, i32) {
    %c0_i32 = arith.constant 0 : i32
    %c0_i32_0 = arith.constant 0 : i32
    %c0_i32_1 = arith.constant 0 : i32
    return %c0_i32, %c0_i32_0 : i32, i32
  }
}

</mosaic_0001>

<llo_original>
// kernel: tpu_custom_call.1
$region0: #{tpu_custom_call.1}
  #allocation0 [shape = 'u32[]', space=smem, size = 0x4, offset = 0x4, fixed_abs, tag = 'smem constant byte address 0x4 - core index']
  #allocation1 [shape = 'u32[144,128]{1,0:T(1,128)}', space=vmem, size = 0x12000, scoped, tag = 'internal scratch']
  #allocation2 [shape = 'f32[8,1]{1,0:T(8,128)}', space=vmem, size = 0x1000, scoped, tag = 'scratch operand']
  %s0 = inlined_call_operand.vmem [shape: f32[8,32], index: 0, kind: input, shape index: {}]
  %s1 = inlined_call_operand.vmem [shape: s32[8,1], index: 1, kind: input, shape index: {}]
  %s2 = inlined_call_operand.hbm [shape: f32[1,1], index: 2, kind: output, shape index: {}]
  %s3 = sld [smem:[#allocation0]]
  $region26: #{tpu_custom_call.1} parent=0
    _
  %s5 = ssub.s32 1, %s3
  %s6 = scalar_select 0, %s5, %s3
  $region1: #{tpu_custom_call.1} parent=0
    #allocation3 [shape = 'u8[512]{0}', space=smem, size = 0x200, scoped, tag = 'output window, operand 0, single buffered']
    #allocation4 [shape = 's32[1]{0}', space=sflag, size = 0x4, scoped, tag = 'scoped memory for tpu_custom_call.1']
    %7 = vsyncpa [#allocation4], 0
    // Predicated region
    $region2: #{tpu_custom_call.1} parent=1 // pred_check
      _
    $region3: #{tpu_custom_call.1} parent=1 // pred_check_branch
      %9 = sbr.rel (0) target = $region5
    $region4: #{tpu_custom_call.1} parent=1 // pred_region
      _
    $region5: #{tpu_custom_call.1} parent=1 // pred_fallthru
      _
    // Predicated region
    $region6: #{tpu_custom_call.1} parent=1 // pred_check
      _
    $region7: #{tpu_custom_call.1} parent=1 // pred_check_branch
      %11 = sbr.rel (0) target = $region9
    $region8: #{tpu_custom_call.1} parent=1 // pred_region
      _
    $region9: #{tpu_custom_call.1} parent=1 // pred_fallthru
      _
    %p12 = scmp.eq.s32.totalorder 0, 0
    // Predicated region
    $region10: #{tpu_custom_call.1} parent=1 // pred_check
      %p13 = pneg %p12
    $region11: #{tpu_custom_call.1} parent=1 // pred_check_branch
      %15 = sbr.rel (%p13) target = $region13
    $region12: #{tpu_custom_call.1} parent=1 // pred_region
      %vm16 = vcmask 7168
      %17 = vst.msk [vmem:[#allocation2] sm:$0xff] %vm16, 0.0
    $region13: #{tpu_custom_call.1} parent=1 // pred_fallthru
      _
    %v18 = vld [vmem:[%s0] sm:$0xff]
    %v19 = vld [vmem:[%s1] sm:$0xff]
    %vm20 = vcmask 261120
    %v21 = vsel %vm20, %v18, -inf
    %22 = vmax.xlane.f32.xlu0 %v21
    %v23 = vpop.xlane.xlu0 %22
    %v24 = vsub.f32 %v18, %v23
    %v25 = vmul.f32 %v24, 1.442695
    %v26 = vpow.pop %v25
    %v27 = vsel %vm20, %v26, 0.0
    %28 = vadd.xlane.f32.xlu0 %v27
    %v29 = vpop.xlane.xlu0 %28
    %v30 = vlog2.pop %v29
    %v31 = vmul.f32 %v30, 0.6931472
    %v32 = vlaneseq
    %v33 = vand.u32 %v32, 127
    %34 = vset.pattern.permute.xlu0 0
    %35 = vperm.xlu0 %34, %v19
    %v36 = vpop.permute.xlu0 %35
    %vm37 = vcmp.eq.s32.totalorder %v33, %v36
    %v38 = vsel %vm37, %v24, 0.0
    %v39 = vsel %vm20, %v38, 0.0
    %40 = vadd.xlane.f32.xlu0 %v39
    %v41 = vpop.xlane.xlu0 %40
    %v42 = vsub.f32 %v31, %v41
    %v43 = vlaneseq
    %v44 = vshrl.u32 %v43, 7
    %s45 = smul.u32 0, 8
    %v46 = vstv %s45
    %v47 = vadd.s32 %v44, %v46
    %vm48 = vcmp.lt.s32.totalorder %v47, 8
    %v49 = vsel %vm48, %v42, 0.0
    %v50 = vld [vmem:[#allocation2] sm:$0xff]
    %v51 = vadd.f32 %v50, %v49
    %vm52 = vcmask 7168
    %53 = vst.msk [vmem:[#allocation2] sm:$0xff] %vm52, %v51
    // Predicated region
    $region14: #{tpu_custom_call.1} parent=1 // pred_check
      %p54 = pneg %p12
    $region15: #{tpu_custom_call.1} parent=1 // pred_check_branch
      %56 = sbr.rel (%p54) target = $region17
    $region16: #{tpu_custom_call.1} parent=1 // pred_region
      %v57 = vld [vmem:[#allocation2] sm:$0xff]
      %v58 = vsel %vm52, %v57, 0.0
      %59 = vadd.xlane.f32.xlu0 %v58
      %v60 = vpop.xlane.xlu0 %59
      %v61 = vrot.slane %v60, 4
      %v62 = vadd.f32 %v60, %v61
      %v63 = vrot.slane %v62, 2
      %v64 = vadd.f32 %v62, %v63
      %v65 = vrot.slane %v64, 1
      %v66 = vadd.f32 %v64, %v65
      %s67 = vtos %v66
      %s68 = smul.f32 %s67, 0.125
      %s69 = scalar_lea.smem [#allocation3], 0
      %70 = sst [smem:[%s69]] %s68
    $region17: #{tpu_custom_call.1} parent=1 // pred_fallthru
      _
    // Predicated region
    $region18: #{tpu_custom_call.1} parent=1 // pred_check
      _
    $region19: #{tpu_custom_call.1} parent=1 // pred_check_branch
      %72 = sbr.rel (0) target = $region21
    $region20: #{tpu_custom_call.1} parent=1 // pred_region
      %s74 = ssub.s32 16, 16
      %75 = vsyncadd [#allocation4], %s74
      %78 = dma.smem_to_hbm [#allocation3], 16, %s2, [#allocation4]
    $region21: #{tpu_custom_call.1} parent=1 // pred_fallthru
      _
    // Predicated region
    $region22: #{tpu_custom_call.1} parent=1 // pred_check
      _
    $region23: #{tpu_custom_call.1} parent=1 // pred_check_branch
      %80 = sbr.rel (0) target = $region25
    $region24: #{tpu_custom_call.1} parent=1 // pred_region
      %81 = dma.done [#allocation4], 16
    $region25: #{tpu_custom_call.1} parent=1 // pred_fallthru
      _
    %82 = sfence
    %83 = vsyncpa [#allocation4], 1

</llo_original>
